<compile_context>
chip_gen: v6e
topology: v6e:2x2x1
jax: 0.10.0
libtpu: 0.0.40
codegen_flags: <defaults>
</compile_context>

<pallas_src>
import jax
import jax.numpy as jnp
from jax import lax
from jax.experimental import pallas as pl
from jax.experimental.pallas import tpu as pltpu


# ---------------------------------------------------------------------------
# Pallas kernel: both dynamic graphs in one invocation, one MXU dot.
#   x_ref : (2N, C)  rows 0..N-1 = origin-graph rows (p), rows N..2N-1 = dest rows (e)
#   w_ref : (2N, C)  matching diagonal weights broadcast along the contraction axis
#   o_ref : (2, N, N)  o_ref[0] = O graph, o_ref[1] = D graph
# ---------------------------------------------------------------------------
def _dgc_kernel(x_ref, w_ref, o_ref):
    x = x_ref[...]                                   # (2N, C) f32
    w = w_ref[...]                                   # (2N, C) f32
    n = x.shape[0] // 2

    # Single block-diagonal MXU dot, contraction depth C = B*N*H.
    s = lax.dot_general(x * w, x,
                        (((1,), (1,)), ((), ())),
                        preferred_element_type=jnp.float32)      # (2N, 2N)
    s = jnp.maximum(s, 0.0)                          # ReLU

    def _row_softmax(blk):                           # softmax over dim=1
        m = jnp.max(blk, axis=1, keepdims=True)
        e = jnp.exp(blk - m)
        inv = pl.reciprocal(jnp.sum(e, axis=1, keepdims=True), approx=True)
        return e * inv

    # Only the two diagonal blocks of the fused result are meaningful.
    # TODO(synk): at N>=64 write the two graphs side-by-side as (N, 2N) for
    # lane-dense stores; at N=16 the masked store is negligible.
    o_ref[0] = _row_softmax(s[:n, :n]).astype(o_ref.dtype)
    o_ref[1] = _row_softmax(s[n:, n:]).astype(o_ref.dtype)


# ---------------------------------------------------------------------------
# Wrapper: layout plumbing + single grid-less pallas_call
# ---------------------------------------------------------------------------
@jax.jit
def dyn_graph_constructor(x_t, W_o, W_d):
    """x_t: (B, N, N, H) as in torch's 'bpdh'; returns (O, D), each (N, N)."""
    B, P, Dn, H = x_t.shape
    assert P == Dn, "x_t must be (batch, num_nodes, num_nodes, feat)"
    N = P
    C = B * N * H

    x_t = x_t.astype(jnp.float32)
    # O: rows indexed by p (origin), contraction over (b, d, h)
    xo = jnp.transpose(x_t, (1, 0, 2, 3)).reshape(N, C)
    # D: rows indexed by e (dest),   contraction over (b, o, h)
    xd = jnp.transpose(x_t, (2, 0, 1, 3)).reshape(N, C)
    x_cat = jnp.concatenate([xo, xd], axis=0)                    # (2N, C)

    # Diagonal weights broadcast along the same (b, node, h) contraction layout,
    # one row per LHS row (top half uses diag(W_o), bottom half diag(W_d)).
    wo = jnp.broadcast_to(jnp.diag(W_o)[None, :, None], (B, N, H)).reshape(1, C)
    wd = jnp.broadcast_to(jnp.diag(W_d)[None, :, None], (B, N, H)).reshape(1, C)
    w_cat = jnp.concatenate([jnp.broadcast_to(wo, (N, C)),
                             jnp.broadcast_to(wd, (N, C))], axis=0)  # (2N, C)

    out = pl.pallas_call(
        _dgc_kernel,
        out_shape=jax.ShapeDtypeStruct((2, N, N), jnp.float32),
        # No grid: one invocation, full-array blocks (shapes == array dims, so the
        # (8,128) tiling rule is satisfied trivially).
        in_specs=[pl.BlockSpec((2 * N, C), lambda: (0, 0)),
                  pl.BlockSpec((2 * N, C), lambda: (0, 0))],
        out_specs=pl.BlockSpec((2, N, N), lambda: (0, 0, 0)),
        compiler_params=pltpu.CompilerParams(
            # Let XLA fuse the relayout (transpose/reshape/concat/broadcast) into
            # the pallas operands instead of materializing them in HBM first.
            allow_input_fusion=[True, True]),
    )(x_cat, w_cat)

    return out[0], out[1]


# ---------------------------------------------------------------------------
if __name__ == "__main__":
    B, N, H = 2, 16, 4                               # batch, num_nodes, feat

    key = jax.random.PRNGKey(0)
    kx, ko, kd = jax.random.split(key, 3)
    x_t = jax.random.normal(kx, (B, N, N, H), jnp.float32)
    # xavier_normal_ for an (N, N) parameter: std = sqrt(2 / (N + N))
    std = (2.0 / (N + N)) ** 0.5
    W_o = std * jax.random.normal(ko, (N, N), jnp.float32)
    W_d = std * jax.random.normal(kd, (N, N), jnp.float32)

    O, D = jax.block_until_ready(dyn_graph_constructor(x_t, W_o, W_d))

    # Pure-JAX reference, mirroring the torch einsum exactly (diag of W_o / W_d).
    so = jnp.einsum('bpdh,d,bqdh->pq', x_t, jnp.diag(W_o), x_t)
    sd = jnp.einsum('boeh,o,bofh->ef', x_t, jnp.diag(W_d), x_t)
    O_ref = jax.nn.softmax(jnp.maximum(so, 0.0), axis=1)
    D_ref = jax.nn.softmax(jnp.maximum(sd, 0.0), axis=1)

    assert O.shape == (N, N) and D.shape == (N, N), (O.shape, D.shape)
    assert bool(jnp.all(jnp.isfinite(O))) and bool(jnp.all(jnp.isfinite(D)))
    # Outputs are softmax probabilities in [0, 1]; tolerance covers MXU-pass
    # rounding and the approx-EUP reciprocal (~1e-3) vs the XLA reference einsum.
    assert bool(jnp.allclose(O, O_ref, atol=1e-2, rtol=1e-2)), \
        float(jnp.max(jnp.abs(O - O_ref)))
    assert bool(jnp.allclose(D, D_ref, atol=1e-2, rtol=1e-2)), \
        float(jnp.max(jnp.abs(D - D_ref)))

    print("KERNEL_OK")
</pallas_src>

<mosaic_0001>
module attributes {stable_mosaic.version = 11 : i64} {
  func.func @_dgc_kernel(%arg0: memref<32x128xf32, #tpu.memory_space<vmem>>, %arg1: memref<32x128xf32, #tpu.memory_space<vmem>>, %arg2: memref<2x16x16xf32, #tpu.memory_space<vmem>>) attributes {dimension_semantics = [], scalar_prefetch = 0 : i64, scratch_operands = 0 : i64, tpu.core_type = #tpu.core_type<tc>} {
    %c0 = arith.constant 0 : index
    %c0_0 = arith.constant 0 : index
    %0 = vector.load %arg0[%c0, %c0_0] : memref<32x128xf32, #tpu.memory_space<vmem>>, vector<32x128xf32>
    %c0_1 = arith.constant 0 : index
    %c0_2 = arith.constant 0 : index
    %1 = vector.load %arg1[%c0_1, %c0_2] : memref<32x128xf32, #tpu.memory_space<vmem>>, vector<32x128xf32>
    %2 = arith.mulf %0, %1 : vector<32x128xf32>
    %cst = arith.constant dense<0.000000e+00> : vector<32x32xf32>
    %3 = tpu.matmul %2, %0, %cst {dimension_numbers = #tpu.dot_dimension_numbers<[1], [1], [0], [0], [0, 0, 1, 0], [], []>} : vector<32x128xf32>, vector<32x128xf32>, vector<32x32xf32> -> vector<32x32xf32>
    %cst_3 = arith.constant 0.000000e+00 : f32
    %4 = vector.broadcast %cst_3 : f32 to vector<32x32xf32>
    %5 = arith.maximumf %3, %4 : vector<32x32xf32>
    %6 = vector.extract_strided_slice %5 {offsets = [0, 0], sizes = [16, 16], strides = [1, 1]} : vector<32x32xf32> to vector<16x16xf32>
    %cst_4 = arith.constant dense<0xFF800000> : vector<16xf32>
    %7 = vector.multi_reduction <maximumf>, %6, %cst_4 [1] : vector<16x16xf32> to vector<16xf32>
    %8 = vector.shape_cast %7 : vector<16xf32> to vector<16x1xf32>
    %9 = vector.broadcast %8 : vector<16x1xf32> to vector<16x16xf32>
    %10 = arith.subf %6, %9 : vector<16x16xf32>
    %11 = math.exp %10 : vector<16x16xf32>
    %cst_5 = arith.constant dense<0.000000e+00> : vector<16xf32>
    %12 = vector.multi_reduction <add>, %11, %cst_5 [1] : vector<16x16xf32> to vector<16xf32>
    %13 = vector.shape_cast %12 : vector<16xf32> to vector<16x1xf32>
    %14 = tpu.reciprocal %13 {approx = true} : vector<16x1xf32> -> vector<16x1xf32>
    %15 = vector.broadcast %14 : vector<16x1xf32> to vector<16x16xf32>
    %16 = arith.mulf %11, %15 : vector<16x16xf32>
    %c0_6 = arith.constant 0 : index
    %c0_7 = arith.constant 0 : index
    %c0_8 = arith.constant 0 : index
    %17 = vector.load %arg2[%c0_6, %c0_7, %c0_8] : memref<2x16x16xf32, #tpu.memory_space<vmem>>, vector<1x16x16xf32>
    %18 = vector.shape_cast %17 : vector<1x16x16xf32> to vector<16x16xf32>
    %19 = vector.shape_cast %16 : vector<16x16xf32> to vector<1x16x16xf32>
    tpu.vector_store %arg2[%c0_6, %c0_7, %c0_8], %19 {strides = array<i32>} : memref<2x16x16xf32, #tpu.memory_space<vmem>>, vector<1x16x16xf32>,
    %20 = vector.extract_strided_slice %5 {offsets = [16, 16], sizes = [16, 16], strides = [1, 1]} : vector<32x32xf32> to vector<16x16xf32>
    %cst_9 = arith.constant dense<0xFF800000> : vector<16xf32>
    %21 = vector.multi_reduction <maximumf>, %20, %cst_9 [1] : vector<16x16xf32> to vector<16xf32>
    %22 = vector.shape_cast %21 : vector<16xf32> to vector<16x1xf32>
    %23 = vector.broadcast %22 : vector<16x1xf32> to vector<16x16xf32>
    %24 = arith.subf %20, %23 : vector<16x16xf32>
    %25 = math.exp %24 : vector<16x16xf32>
    %cst_10 = arith.constant dense<0.000000e+00> : vector<16xf32>
    %26 = vector.multi_reduction <add>, %25, %cst_10 [1] : vector<16x16xf32> to vector<16xf32>
    %27 = vector.shape_cast %26 : vector<16xf32> to vector<16x1xf32>
    %28 = tpu.reciprocal %27 {approx = true} : vector<16x1xf32> -> vector<16x1xf32>
    %29 = vector.broadcast %28 : vector<16x1xf32> to vector<16x16xf32>
    %30 = arith.mulf %25, %29 : vector<16x16xf32>
    %c1 = arith.constant 1 : index
    %c0_11 = arith.constant 0 : index
    %c0_12 = arith.constant 0 : index
    %31 = vector.load %arg2[%c1, %c0_11, %c0_12] : memref<2x16x16xf32, #tpu.memory_space<vmem>>, vector<1x16x16xf32>
    %32 = vector.shape_cast %31 : vector<1x16x16xf32> to vector<16x16xf32>
    %33 = vector.shape_cast %30 : vector<16x16xf32> to vector<1x16x16xf32>
    tpu.vector_store %arg2[%c1, %c0_11, %c0_12], %33 {strides = array<i32>} : memref<2x16x16xf32, #tpu.memory_space<vmem>>, vector<1x16x16xf32>,
    return
  }
}

</mosaic_0001>

<llo_original>
// kernel: dyn_graph_constructor.2
$region0: #{dyn_graph_constructor.2}
  #allocation0 [shape = 'u32[]', space=smem, size = 0x4, offset = 0x4, fixed_abs, tag = 'smem constant byte address 0x4 - core index']
  #allocation1 [shape = 'u32[144,128]{1,0:T(1,128)}', space=vmem, size = 0x12000, scoped, tag = 'internal scratch']
  #allocation2 [shape = 'u32[2048]{0}', space=vmem, size = 0x2000, scoped, tag = 'scoped memory for dyn_graph_constructor.2']
  #allocation3 [shape = 'u32[2048]{0}', space=vmem, size = 0x2000, scoped, tag = 'scoped memory for dyn_graph_constructor.2']
  #allocation4 [shape = 'u32[2048]{0}', space=vmem, size = 0x2000, scoped, tag = 'scoped memory for dyn_graph_constructor.2']
  #allocation5 [shape = 'u32[2048]{0}', space=vmem, size = 0x2000, scoped, tag = 'scoped memory for dyn_graph_constructor.2']
  #allocation6 [shape = 'u32[2048]{0}', space=vmem, size = 0x2000, scoped, tag = 'scoped memory for dyn_graph_constructor.2']
  #allocation7 [shape = 'u32[2048]{0}', space=vmem, size = 0x2000, scoped, tag = 'scoped memory for dyn_graph_constructor.2']
  #allocation8 [shape = 'u32[2048]{0}', space=vmem, size = 0x2000, scoped, tag = 'scoped memory for dyn_graph_constructor.2']
  #allocation9 [shape = 'u32[2048]{0}', space=vmem, size = 0x2000, scoped, tag = 'scoped memory for dyn_graph_constructor.2']
  #allocation10 [shape = 'u32[2048]{0}', space=vmem, size = 0x2000, scoped, tag = 'scoped memory for dyn_graph_constructor.2']
  #allocation11 [shape = 'u32[2048]{0}', space=vmem, size = 0x2000, scoped, tag = 'scoped memory for dyn_graph_constructor.2']
  #allocation12 [shape = 'u32[2048]{0}', space=vmem, size = 0x2000, scoped, tag = 'scoped memory for dyn_graph_constructor.2']
  #allocation13 [shape = 'u32[2048]{0}', space=vmem, size = 0x2000, scoped, tag = 'scoped memory for dyn_graph_constructor.2']
  #allocation14 [shape = 'u32[2048]{0}', space=vmem, size = 0x2000, scoped, tag = 'scoped memory for dyn_graph_constructor.2']
  #allocation15 [shape = 'u32[2048]{0}', space=vmem, size = 0x2000, scoped, tag = 'scoped memory for dyn_graph_constructor.2']
  #allocation16 [shape = 'u32[2048]{0}', space=vmem, size = 0x2000, scoped, tag = 'scoped memory for dyn_graph_constructor.2']
  #allocation17 [shape = 'u32[2048]{0}', space=vmem, size = 0x2000, scoped, tag = 'scoped memory for dyn_graph_constructor.2']
  #allocation18 [shape = 'u32[2048]{0}', space=vmem, size = 0x2000, scoped, tag = 'scoped memory for dyn_graph_constructor.2']
  #allocation19 [shape = 'u32[2048]{0}', space=vmem, size = 0x2000, scoped, tag = 'scoped memory for dyn_graph_constructor.2']
  #allocation20 [shape = 'u32[2048]{0}', space=vmem, size = 0x2000, scoped, tag = 'scoped memory for dyn_graph_constructor.2']
  #allocation21 [shape = 'u32[2048]{0}', space=vmem, size = 0x2000, scoped, tag = 'scoped memory for dyn_graph_constructor.2']
  %s0 = inlined_call_operand.vmem [shape: f32[16,128], index: 0, kind: input, shape index: {}]
  %s1 = inlined_call_operand.<no memory space> [shape: f32[], index: 1, kind: input, shape index: {}]
  %s2 = inlined_call_operand.vmem [shape: f32[16,128], index: 2, kind: input, shape index: {}]
  %s3 = inlined_call_operand.vmem [shape: f32[16,128], index: 3, kind: input, shape index: {}]
  %s4 = inlined_call_operand.vmem [shape: f32[16,128], index: 4, kind: input, shape index: {}]
  %s5 = inlined_call_operand.vmem [shape: f32[2,16,16], index: 5, kind: output, shape index: {}]
  %s6 = sld [smem:[#allocation0]]
  $region26: #{dyn_graph_constructor.2} parent=0
    _
  %s8 = ssub.s32 1, %s6
  %s9 = scalar_select 0, %s8, %s6
  %v10 = vstv %s1
  %v11 = vstv %s1
  %v12 = vstv %s1
  %v13 = vstv %s1
  $region1: #{dyn_graph_constructor.2} parent=0
    #allocation22 [shape = 'u8[16384]{0}', space=vmem, size = 0x4000, dematerialized = true, scoped, tag = 'FusionAdapter Buffer %fusion.1 = f32[32,128]{1,0:T(8,128)} fusion(%param_0.14, %param_1.22, %param_2.19), kind=kLoop, calls=%fused_computation.3.clone, metadata={op_name="jit(dyn_graph_constructor)/concatenate" stack_frame_id=9}']
    #allocation23 [shape = 'u8[16384]{0}', space=vmem, size = 0x4000, dematerialized = true, scoped, tag = 'FusionAdapter Buffer %fusion.4 = f32[32,128]{1,0:T(8,128)} fusion(%param_3.15, %param_1.22, %param_4.2), kind=kLoop, calls=%fused_computation.6.clone, metadata={op_name="jit(dyn_graph_constructor)/concatenate" stack_frame_id=18}']
    // Predicated region
    $region2: #{dyn_graph_constructor.2} parent=1 // pred_check
      _
    $region3: #{dyn_graph_constructor.2} parent=1 // pred_check_branch
      %15 = sbr.rel (0) target = $region5
    $region4: #{dyn_graph_constructor.2} parent=1 // pred_region
      %s16 = scalar_lea.vmem %s0, 4294967280
    $region5: #{dyn_graph_constructor.2} parent=1 // pred_fallthru
      _
    // Predicated region
    $region6: #{dyn_graph_constructor.2} parent=1 // pred_check
      _
    $region7: #{dyn_graph_constructor.2} parent=1 // pred_check_branch
      %18 = sbr.rel (0) target = $region9
    $region8: #{dyn_graph_constructor.2} parent=1 // pred_region
      _
    $region9: #{dyn_graph_constructor.2} parent=1 // pred_fallthru
      _
    // Predicated region
    $region10: #{dyn_graph_constructor.2} parent=1 // pred_check
      _
    $region11: #{dyn_graph_constructor.2} parent=1 // pred_check_branch
      %20 = sbr.rel (0) target = $region13
    $region12: #{dyn_graph_constructor.2} parent=1 // pred_region
      %s21 = scalar_lea.vmem %s3, 4294967280
    $region13: #{dyn_graph_constructor.2} parent=1 // pred_fallthru
      _
    // Predicated region
    $region14: #{dyn_graph_constructor.2} parent=1 // pred_check
      _
    $region15: #{dyn_graph_constructor.2} parent=1 // pred_check_branch
      %23 = sbr.rel (0) target = $region17
    $region16: #{dyn_graph_constructor.2} parent=1 // pred_region
      _
    $region17: #{dyn_graph_constructor.2} parent=1 // pred_fallthru
      _
    %s24 = scalar_lea.vmem %s0, 4294967280
    %s25 = scalar_lea.vmem %s3, 4294967280
    %s26 = scalar_lea.vmem %s0, 4294967280
    %s27 = scalar_lea.vmem %s3, 4294967280
    %v28 = vld [vmem:[%s2] sm:$0xff]
    %29 = xla_tuple %v28, %v10
    %30 = xla_tuple %29
    %v31 = vmax.f32 %v28, %v10
    %32 = xla_tuple %v31
    %s34 = ssub.s32 256, 1
    %35 = vst [vmem:[#allocation22] sm:%s34] %v31
    %s36 = scalar_lea.vmem %s26, 8
    %s37 = scalar_lea.vmem %s2, 8
    %v38 = vld [vmem:[%s37] sm:$0xff]
    %39 = xla_tuple %v38, %v10
    %40 = xla_tuple %39
    %v41 = vmax.f32 %v38, %v10
    %42 = xla_tuple %v41
    %s43 = scalar_lea.vmem [#allocation22], 8
    %s45 = ssub.s32 256, 1
    %46 = vst [vmem:[%s43] sm:%s45] %v41
    %s47 = scalar_lea.vmem %s26, 16
    %v48 = vld [vmem:[%s47] sm:$0xff]
    %49 = xla_tuple %v11, %v48
    %50 = xla_tuple %49
    %v51 = vmax.f32 %v11, %v48
    %52 = xla_tuple %v51
    %s53 = scalar_lea.vmem [#allocation22], 16
    %s55 = ssub.s32 256, 1
    %56 = vst [vmem:[%s53] sm:%s55] %v51
    %s57 = scalar_lea.vmem %s26, 24
    %v58 = vld [vmem:[%s57] sm:$0xff]
    %59 = xla_tuple %v11, %v58
    %60 = xla_tuple %59
    %v61 = vmax.f32 %v11, %v58
    %62 = xla_tuple %v61
    %s63 = scalar_lea.vmem [#allocation22], 24
    %s65 = ssub.s32 256, 1
    %66 = vst [vmem:[%s63] sm:%s65] %v61
    %v67 = vld [vmem:[%s4] sm:$0xff]
    %68 = xla_tuple %v67, %v12
    %69 = xla_tuple %68
    %v70 = vmax.f32 %v67, %v12
    %71 = xla_tuple %v70
    %s73 = ssub.s32 256, 1
    %74 = vst [vmem:[#allocation23] sm:%s73] %v70
    %s75 = scalar_lea.vmem %s27, 8
    %s76 = scalar_lea.vmem %s4, 8
    %v77 = vld [vmem:[%s76] sm:$0xff]
    %78 = xla_tuple %v77, %v12
    %79 = xla_tuple %78
    %v80 = vmax.f32 %v77, %v12
    %81 = xla_tuple %v80
    %s82 = scalar_lea.vmem [#allocation23], 8
    %s84 = ssub.s32 256, 1
    %85 = vst [vmem:[%s82] sm:%s84] %v80
    %s86 = scalar_lea.vmem %s27, 16
    %v87 = vld [vmem:[%s86] sm:$0xff]
    %88 = xla_tuple %v13, %v87
    %89 = xla_tuple %88
    %v90 = vmax.f32 %v13, %v87
    %91 = xla_tuple %v90
    %s92 = scalar_lea.vmem [#allocation23], 16
    %s94 = ssub.s32 256, 1
    %95 = vst [vmem:[%s92] sm:%s94] %v90
    %s96 = scalar_lea.vmem %s27, 24
    %v97 = vld [vmem:[%s96] sm:$0xff]
    %98 = xla_tuple %v13, %v97
    %99 = xla_tuple %98
    %v100 = vmax.f32 %v13, %v97
    %101 = xla_tuple %v100
    %s102 = scalar_lea.vmem [#allocation23], 24
    %s104 = ssub.s32 256, 1
    %105 = vst [vmem:[%s102] sm:%s104] %v100
    %v106 = vld [vmem:[#allocation22] sm:$0xff]
    %v107 = vld [vmem:[#allocation22 + $0x8] sm:$0xff]
    %v108 = vld [vmem:[#allocation22 + $0x10] sm:$0xff]
    %v109 = vld [vmem:[#allocation22 + $0x18] sm:$0xff]
    %v110 = vld [vmem:[#allocation23] sm:$0xff]
    %v111 = vld [vmem:[#allocation23 + $0x8] sm:$0xff]
    %v112 = vld [vmem:[#allocation23 + $0x10] sm:$0xff]
    %v113 = vld [vmem:[#allocation23 + $0x18] sm:$0xff]
    %v114 = vmul.f32 %v106, %v110
    %v115 = vmul.f32 %v107, %v111
    %v116 = vmul.f32 %v108, %v112
    %v117 = vmul.f32 %v109, %v113
    %118 = vmatprep.subr.mxu0 0.0
    %119 = vmatpush1.xpose.msra.mxu0 0.0
    %120 = vmatprep.subr.mxu0 0.0
    %121 = vmatpush1.xpose.msra.mxu0 0.0
    %122 = vmatprep.subr.mxu0 0.0
    %123 = vmatpush1.xpose.msra.mxu0 0.0
    %124 = vmatprep.subr.mxu0 0.0
    %125 = vmatpush1.xpose.msra.mxu0 0.0
    %126 = vmatprep.subr.mxu0 0.0
    %127 = vmatpush1.xpose.msra.mxu0 0.0
    %128 = vmatprep.subr.mxu0 0.0
    %129 = vmatpush1.xpose.msra.mxu0 0.0
    %130 = vmatprep.subr.mxu0 0.0
    %131 = vmatpush1.xpose.msra.mxu0 0.0
    %132 = vmatprep.subr.mxu0 0.0
    %133 = vmatpush1.xpose.msra.mxu0 0.0
    %134 = vmatprep.subr.mxu0 0.0
    %135 = vmatpush1.xpose.msra.mxu0 0.0
    %136 = vmatprep.subr.mxu0 0.0
    %137 = vmatpush1.xpose.msra.mxu0 0.0
    %138 = vmatprep.subr.mxu0 0.0
    %139 = vmatpush1.xpose.msra.mxu0 0.0
    %140 = vmatprep.subr.mxu0 0.0
    %141 = vmatpush1.xpose.msra.mxu0 0.0
    %142 = vmatprep.subr.mxu0 0.0
    %143 = vmatpush1.xpose.msra.mxu0 %v109
    %144 = vmatprep.subr.mxu0 0.0
    %145 = vmatpush1.xpose.msra.mxu0 %v108
    %146 = vmatprep.subr.mxu0 0.0
    %147 = vmatpush1.xpose.msra.mxu0 %v107
    %148 = vmatprep.subr.mxu0 0.0
    %149 = vmatpush1.xpose.msra.mxu0 %v106
    %150 = vmatprep.subr.mxu0 0.0
    %151 = vmatpush2.xpose.msra.mxu0 0.0
    %152 = vmatprep.subr.mxu0 0.0
    %153 = vmatpush2.xpose.msra.mxu0 0.0
    %154 = vmatprep.subr.mxu0 0.0
    %155 = vmatpush2.xpose.msra.mxu0 0.0
    %156 = vmatprep.subr.mxu0 0.0
    %157 = vmatpush2.xpose.msra.mxu0 0.0
    %158 = vmatprep.subr.mxu0 0.0
    %159 = vmatpush2.xpose.msra.mxu0 0.0
    %160 = vmatprep.subr.mxu0 0.0
    %161 = vmatpush2.xpose.msra.mxu0 0.0
    %162 = vmatprep.subr.mxu0 0.0
    %163 = vmatpush2.xpose.msra.mxu0 0.0
    %164 = vmatprep.subr.mxu0 0.0
    %165 = vmatpush2.xpose.msra.mxu0 0.0
    %166 = vmatprep.subr.mxu0 0.0
    %167 = vmatpush2.xpose.msra.mxu0 0.0
    %168 = vmatprep.subr.mxu0 0.0
    %169 = vmatpush2.xpose.msra.mxu0 0.0
    %170 = vmatprep.subr.mxu0 0.0
    %171 = vmatpush2.xpose.msra.mxu0 0.0
    %172 = vmatprep.subr.mxu0 0.0
    %173 = vmatpush2.xpose.msra.mxu0 0.0
    %174 = vmatprep.subr.mxu0 0.0
    %175 = vmatpush2.xpose.msra.mxu0 0.0
    %176 = vmatprep.subr.mxu0 0.0
    %177 = vmatpush2.xpose.msra.mxu0 0.0
    %178 = vmatprep.subr.mxu0 0.0
    %179 = vmatpush2.xpose.msra.mxu0 0.0
    %180 = vmatprep.subr.mxu0 0.0
    %181 = vmatpush2.xpose.msra.mxu0 0.0
    %182 = vmatprep.mubr.f32.mxu0 0.0
    %183 = vmatmul.mubr.f32.gmra.mxu0 %v114
    %v184 = vpop.f32.mrf.mxu0
    %v185 = vadd.f32 0.0, %v184
    %v186 = vpop.f32.mrf.mxu0
    %187 = vmatprep.mubr.f32.mxu0 0.0
    %188 = vmatmul.mubr.f32.gmra.mxu0 %v115
    %v189 = vpop.f32.mrf.mxu0
    %v190 = vadd.f32 0.0, %v189
    %v191 = vpop.f32.mrf.mxu0
    %192 = vmatprep.mubr.f32.mxu0 0.0
    %193 = vmatmul.mubr.f32.gmra.mxu0 %v116
    %v194 = vpop.f32.mrf.mxu0
    %v195 = vadd.f32 0.0, %v194
    %v196 = vpop.f32.mrf.mxu0
    %197 = vmatprep.mubr.f32.mxu0 0.0
    %198 = vmatmul.mubr.f32.gmra.mxu0 %v117
    %v199 = vpop.f32.mrf.mxu0
    %v200 = vadd.f32 0.0, %v199
    %v201 = vpop.f32.mrf.mxu0
    %202 = vdwg.mxu0
    %v203 = vmax.f32 %v185, 0.0
    %v204 = vmax.f32 %v190, 0.0
    %v205 = vmax.f32 %v195, 0.0
    %v206 = vmax.f32 %v200, 0.0
    %vm207 = vcmask 130048
    %v208 = vsel %vm207, %v203, -inf
    %209 = vmax.xlane.f32.xlu0 %v208
    %v210 = vpop.xlane.xlu0 %209
    %v211 = vsel %vm207, %v204, -inf
    %212 = vmax.xlane.f32.xlu0 %v211
    %v213 = vpop.xlane.xlu0 %212
    %v214 = vsub.f32 %v203, %v210
    %v215 = vsub.f32 %v204, %v213
    %v216 = vmul.f32 %v214, 1.442695
    %v217 = vpow.pop %v216
    %v218 = vmul.f32 %v215, 1.442695
    %v219 = vpow.pop %v218
    %v220 = vsel %vm207, %v217, 0.0
    %221 = vadd.xlane.f32.xlu0 %v220
    %v222 = vpop.xlane.xlu0 %221
    %v223 = vsel %vm207, %v219, 0.0
    %224 = vadd.xlane.f32.xlu0 %v223
    %v225 = vpop.xlane.xlu0 %224
    %v226 = vrcp.pop %v222
    %v227 = vrcp.pop %v225
    %v228 = vmul.f32 %v217, %v226
    %v229 = vmul.f32 %v219, %v227
    %230 = vst.msk [vmem:[%s5] sm:$0xff] %vm207, %v228
    %231 = vst.msk [vmem:[%s5 + $0x8] sm:$0xff] %vm207, %v229
    %vm232 = vcmask 261248
    %v233 = vsel %vm232, %v205, -inf
    %234 = vmax.xlane.f32.xlu0 %v233
    %v235 = vpop.xlane.xlu0 %234
    %v236 = vsel %vm232, %v206, -inf
    %237 = vmax.xlane.f32.xlu0 %v236
    %v238 = vpop.xlane.xlu0 %237
    %v239 = vsub.f32 %v205, %v235
    %v240 = vsub.f32 %v206, %v238
    %v241 = vmul.f32 %v239, 1.442695
    %v242 = vpow.pop %v241
    %v243 = vmul.f32 %v240, 1.442695
    %v244 = vpow.pop %v243
    %247 = vrot.lane.b32.xlu0 %v242, 112
    %v248 = vpop.permute.xlu0 %247
    %249 = vrot.lane.b32.xlu0 %v244, 112
    %v250 = vpop.permute.xlu0 %249
    %v253 = vsel %vm207, %v248, 0.0
    %254 = vadd.xlane.f32.xlu0 %v253
    %v255 = vpop.xlane.xlu0 %254
    %v256 = vsel %vm207, %v250, 0.0
    %257 = vadd.xlane.f32.xlu0 %v256
    %v258 = vpop.xlane.xlu0 %257
    %v259 = vrcp.pop %v255
    %v260 = vrcp.pop %v258
    %v261 = vmul.f32 %v242, %v259
    %v262 = vmul.f32 %v244, %v260
    %265 = vrot.lane.b32.xlu0 %v261, 112
    %v266 = vpop.permute.xlu0 %265
    %267 = vrot.lane.b32.xlu0 %v262, 112
    %v268 = vpop.permute.xlu0 %267
    %s271 = scalar_lea.vmem %s5, 16
    %272 = vst.msk [vmem:[%s271] sm:$0xff] %vm207, %v266
    %273 = vst.msk [vmem:[%s271 + $0x8] sm:$0xff] %vm207, %v268
    // Predicated region
    $region18: #{dyn_graph_constructor.2} parent=1 // pred_check
      _
    $region19: #{dyn_graph_constructor.2} parent=1 // pred_check_branch
      %275 = sbr.rel (0) target = $region21
    $region20: #{dyn_graph_constructor.2} parent=1 // pred_region
      _
    $region21: #{dyn_graph_constructor.2} parent=1 // pred_fallthru
      _
    // Predicated region
    $region22: #{dyn_graph_constructor.2} parent=1 // pred_check
      _
    $region23: #{dyn_graph_constructor.2} parent=1 // pred_check_branch
      %277 = sbr.rel (0) target = $region25
    $region24: #{dyn_graph_constructor.2} parent=1 // pred_region
      _
    $region25: #{dyn_graph_constructor.2} parent=1 // pred_fallthru
      _

</llo_original>
